<compile_context>
chip_gen: v7x
topology: tpu7x:2x2x1
jax: 0.10.0
libtpu: 0.0.40
codegen_flags: <defaults>
</compile_context>

<pallas_src>
import functools

import jax
import jax.numpy as jnp
from jax import lax
from jax.experimental import pallas as pl
from jax.experimental.pallas import tpu as pltpu

EPS = 1e-5
_LANE = 128
_VMEM_LIMIT = 64 * 1024 * 1024  # <= v7x physical VMEM; v5e/v6e have 128 MiB.


def _round_up(x, m):
    return (x + m - 1) // m * m


def _row_tile(m, target):
    """Largest t <= target with m % t == 0 and (t % 8 == 0 or t == m)."""
    t = min(target, m)
    while t > 1:
        if m % t == 0 and (t % 8 == 0 or t == m):
            return t
        t -= 1
    return m


# ---------------------------------------------------------------------------
# Kernels
# ---------------------------------------------------------------------------
def _store_bn_partials(stats_ref, y):
    # Per-channel sum / sum-of-squares via MXU ones-matmuls (keeps the big
    # cross-sublane reduction off the VPU/XLU).  y: (rows, C) f32.
    ones = jnp.ones((1, y.shape[0]), jnp.float32)
    stats_ref[0, 0:1, :] = jnp.dot(ones, y, preferred_element_type=jnp.float32)
    stats_ref[0, 1:2, :] = jnp.dot(ones, y * y,
                                   preferred_element_type=jnp.float32)


def _conv1x1_stats_kernel(x_ref, w_ref, y_ref, stats_ref):
    # y = x @ w  (raw conv1 output) + BN1 partial stats for this tile.
    y = jnp.dot(x_ref[...], w_ref[...], preferred_element_type=jnp.float32)
    y_ref[...] = y.astype(y_ref.dtype)
    _store_bn_partials(stats_ref, y)


def _norm_relu_conv1x1_stats_kernel(y_in_ref, w_ref, scale_ref, shift_ref,
                                    y_ref, stats_ref):
    # h = relu(y_in*scale + shift) (fused BN of previous stage, single FMA),
    # y = h @ w, plus BN partial stats of y.
    h = y_in_ref[...].astype(jnp.float32)
    h = jnp.maximum(h * scale_ref[...] + shift_ref[...], 0.0)
    y = jnp.dot(h.astype(w_ref.dtype), w_ref[...],
                preferred_element_type=jnp.float32)
    y_ref[...] = y.astype(y_ref.dtype)
    _store_bn_partials(stats_ref, y)


def _atrous3x3_kernel(y1_ref, w_ref, scale_ref, shift_ref, y2_ref, stats_ref,
                      xpad_ref, acc_ref, *, rate, pad, H, W):
    # One image per grid step:
    #   h  = relu(bn1(y1))           (fused normalize, f32 math)
    #   hp = zero-pad(h)             (built directly in VMEM scratch)
    #   y2 = sum_{ky,kx} hp[tap] @ w2[ky,kx]   (9 MXU matmuls, f32 VMEM acc)
    # plus BN2 partial stats.
    P = y1_ref.shape[-1]
    Pout = w_ref.shape[-1]
    cdt = xpad_ref.dtype
    Hp = H + 2 * pad
    Wp = W + 2 * pad

    h = y1_ref[0].astype(jnp.float32)                                # (H,W,P)
    h = jnp.maximum(h * scale_ref[...].reshape(1, 1, P)
                    + shift_ref[...].reshape(1, 1, P), 0.0).astype(cdt)

    zw = jnp.zeros((H, pad, P), cdt)
    zh = jnp.zeros((pad, Wp, P), cdt)
    xpad_ref[0:pad, :, :] = zh
    xpad_ref[pad + H:Hp, :, :] = zh
    xpad_ref[pad:pad + H, :, :] = jnp.concatenate([zw, h, zw], axis=1)

    acc_ref[...] = jnp.zeros_like(acc_ref)
    for ky in range(3):
        for kx in range(3):
            tap = xpad_ref[ky * rate:ky * rate + H,
                           kx * rate:kx * rate + W, :]               # (H,W,P)
            acc_ref[...] += jnp.dot(tap.reshape(H * W, P),
                                    w_ref[ky * 3 + kx],
                                    preferred_element_type=jnp.float32)

    y2 = acc_ref[...]                                                # (H*W,Pout)
    y2_ref[...] = y2.reshape(1, H, W, Pout).astype(y2_ref.dtype)
    _store_bn_partials(stats_ref, y2)


def _bn_add_relu_kernel(y_ref, res_ref, scale_ref, shift_ref, o_ref):
    # out = relu(bn3(y3) + residual) -- single FMA + add + max per tile.
    z = (y_ref[...].astype(jnp.float32) * scale_ref[...] + shift_ref[...]
         + res_ref[...].astype(jnp.float32))
    o_ref[...] = jnp.maximum(z, 0.0).astype(o_ref.dtype)


# ---------------------------------------------------------------------------
# Glue: reduce BN partial stats -> per-channel scale/shift (tiny)
# ---------------------------------------------------------------------------
def _bn_scale_shift(stats, count, gamma, beta):
    s = jnp.sum(stats[:, 0, :], axis=0)
    ss = jnp.sum(stats[:, 1, :], axis=0)
    mean = s / count
    var = jnp.maximum(ss / count - mean * mean, 0.0)
    scale = gamma.reshape(-1).astype(jnp.float32) * lax.rsqrt(var + EPS)
    shift = beta.reshape(-1).astype(jnp.float32) - mean * scale
    return scale.reshape(1, -1), shift.reshape(1, -1)


# ---------------------------------------------------------------------------
# Wrapper
# ---------------------------------------------------------------------------
def bottleneck_forward(x_nchw, params, rate=1, padding=1, *,
                       compute_dtype=jnp.float32, tile_rows=512):
    w1, g1, b1, w2, g2, b2, w3, g3, b3 = params
    if padding != rate or rate < 1:
        raise NotImplementedError("only padding == rate >= 1 is supported "
                                  "(identity residual needs Ho==H, Wo==W)")

    cin, p = w1.shape
    c3 = w3.shape[1]
    assert w2.shape == (9, p, p) and w3.shape == (p, c3)
    assert cin == c3, "identity residual requires inplanes == planes*expansion"

    x = jnp.transpose(x_nchw, (0, 2, 3, 1)).astype(jnp.float32)      # NHWC
    N, H, W, _ = x.shape
    M = N * H * W

    # ---- lane-dense channel padding (multiples of 128) ---------------------
    cin_p = max(_LANE, _round_up(cin, _LANE))
    p_p = max(_LANE, _round_up(p, _LANE))
    c3_p = max(_LANE, _round_up(c3, _LANE))
    cdt = compute_dtype
    bpe = jnp.dtype(cdt).itemsize

    def padc(a, tgt):
        return jnp.pad(a, [(0, t - s) for s, t in zip(a.shape, tgt)])

    w1p = padc(w1, (cin_p, p_p)).astype(cdt)
    w2p = padc(w2, (9, p_p, p_p)).astype(cdt)
    w3p = padc(w3, (p_p, c3_p)).astype(cdt)
    g1p = padc(g1.reshape(1, -1), (1, p_p)).astype(jnp.float32)
    b1p = padc(b1.reshape(1, -1), (1, p_p)).astype(jnp.float32)
    g2p = padc(g2.reshape(1, -1), (1, p_p)).astype(jnp.float32)
    b2p = padc(b2.reshape(1, -1), (1, p_p)).astype(jnp.float32)
    g3p = padc(g3.reshape(1, -1), (1, c3_p)).astype(jnp.float32)
    b3p = padc(b3.reshape(1, -1), (1, c3_p)).astype(jnp.float32)

    x_pad = padc(x, (N, H, W, cin_p))                    # f32 residual path
    res2d = x_pad.reshape(M, cin_p)
    x2d_in = res2d.astype(cdt)                           # MXU operand

    tm = _row_tile(M, tile_rows)
    nm = M // tm
    cparams = pltpu.CompilerParams(dimension_semantics=("parallel",),
                                   vmem_limit_bytes=_VMEM_LIMIT)

    # ---- stage A: conv1 (1x1) + BN1 partial stats --------------------------
    ce1 = pl.CostEstimate(
        flops=2 * M * cin_p * p_p + 4 * M * p_p, transcendentals=0,
        bytes_accessed=M * cin_p * bpe + cin_p * p_p * bpe + M * p_p * bpe)
    y1, stats1 = pl.pallas_call(
        _conv1x1_stats_kernel,
        out_shape=(jax.ShapeDtypeStruct((M, p_p), cdt),
                   jax.ShapeDtypeStruct((nm, 2, p_p), jnp.float32)),
        grid=(nm,),
        in_specs=[
            pl.BlockSpec((tm, cin_p), lambda i: (i, 0)),
            pl.BlockSpec((cin_p, p_p), lambda i: (0, 0)),
        ],
        out_specs=(
            pl.BlockSpec((tm, p_p), lambda i: (i, 0)),
            pl.BlockSpec((1, 2, p_p), lambda i: (i, 0, 0)),
        ),
        compiler_params=cparams,
        cost_estimate=ce1,
    )(x2d_in, w1p)
    scale1, shift1 = _bn_scale_shift(stats1, M, g1p, b1p)

    # ---- stage B: BN1+ReLU (fused) + atrous 3x3 conv + BN2 partial stats ---
    y1_4d = y1.reshape(N, H, W, p_p)
    hp_, wp_ = H + 2 * padding, W + 2 * padding
    kern_b = functools.partial(_atrous3x3_kernel, rate=rate, pad=padding,
                               H=H, W=W)
    ce2 = pl.CostEstimate(
        flops=18 * M * p_p * p_p + 8 * M * p_p, transcendentals=0,
        bytes_accessed=2 * M * p_p * bpe + 9 * p_p * p_p * bpe)
    y2, stats2 = pl.pallas_call(
        kern_b,
        out_shape=(jax.ShapeDtypeStruct((N, H, W, p_p), cdt),
                   jax.ShapeDtypeStruct((N, 2, p_p), jnp.float32)),
        grid=(N,),
        in_specs=[
            pl.BlockSpec((1, H, W, p_p), lambda n: (n, 0, 0, 0)),
            pl.BlockSpec((9, p_p, p_p), lambda n: (0, 0, 0)),
            pl.BlockSpec((1, p_p), lambda n: (0, 0)),
            pl.BlockSpec((1, p_p), lambda n: (0, 0)),
        ],
        out_specs=(
            pl.BlockSpec((1, H, W, p_p), lambda n: (n, 0, 0, 0)),
            pl.BlockSpec((1, 2, p_p), lambda n: (n, 0, 0)),
        ),
        scratch_shapes=[
            pltpu.VMEM((hp_, wp_, p_p), cdt),        # spatially padded block
            pltpu.VMEM((H * W, p_p), jnp.float32),   # f32 conv accumulator
        ],
        compiler_params=cparams,
        cost_estimate=ce2,
    )(y1_4d, w2p, scale1, shift1)
    scale2, shift2 = _bn_scale_shift(stats2, M, g2p, b2p)

    # ---- stage C: BN2+ReLU (fused) + conv3 (1x1) + BN3 partial stats -------
    y2_2d = y2.reshape(M, p_p)
    ce3 = pl.CostEstimate(
        flops=2 * M * p_p * c3_p + 2 * M * p_p + 4 * M * c3_p,
        transcendentals=0,
        bytes_accessed=M * p_p * bpe + p_p * c3_p * bpe + M * c3_p * bpe)
    y3, stats3 = pl.pallas_call(
        _norm_relu_conv1x1_stats_kernel,
        out_shape=(jax.ShapeDtypeStruct((M, c3_p), cdt),
                   jax.ShapeDtypeStruct((nm, 2, c3_p), jnp.float32)),
        grid=(nm,),
        in_specs=[
            pl.BlockSpec((tm, p_p), lambda i: (i, 0)),
            pl.BlockSpec((p_p, c3_p), lambda i: (0, 0)),
            pl.BlockSpec((1, p_p), lambda i: (0, 0)),
            pl.BlockSpec((1, p_p), lambda i: (0, 0)),
        ],
        out_specs=(
            pl.BlockSpec((tm, c3_p), lambda i: (i, 0)),
            pl.BlockSpec((1, 2, c3_p), lambda i: (i, 0, 0)),
        ),
        compiler_params=cparams,
        cost_estimate=ce3,
    )(y2_2d, w3p, scale2, shift2)
    scale3, shift3 = _bn_scale_shift(stats3, M, g3p, b3p)

    # ---- stage D: BN3 (fused FMA) + residual add + ReLU ---------------------
    ce4 = pl.CostEstimate(
        flops=4 * M * c3_p, transcendentals=0,
        bytes_accessed=M * c3_p * (bpe + 4 + 4))
    out2d = pl.pallas_call(
        _bn_add_relu_kernel,
        out_shape=jax.ShapeDtypeStruct((M, c3_p), jnp.float32),
        grid=(nm,),
        in_specs=[
            pl.BlockSpec((tm, c3_p), lambda i: (i, 0)),
            pl.BlockSpec((tm, c3_p), lambda i: (i, 0)),
            pl.BlockSpec((1, c3_p), lambda i: (0, 0)),
            pl.BlockSpec((1, c3_p), lambda i: (0, 0)),
        ],
        out_specs=pl.BlockSpec((tm, c3_p), lambda i: (i, 0)),
        compiler_params=cparams,
        cost_estimate=ce4,
    )(y3, res2d, scale3, shift3)

    out = out2d.reshape(N, H, W, c3_p)[..., :c3]
    return jnp.transpose(out, (0, 3, 1, 2))              # back to NCHW


# ---------------------------------------------------------------------------
# Pure-JAX reference (for correctness check)
# ---------------------------------------------------------------------------
def bottleneck_ref(x_nchw, params, rate=1, padding=1):
    w1, g1, b1, w2, g2, b2, w3, g3, b3 = params
    x = jnp.transpose(x_nchw, (0, 2, 3, 1)).astype(jnp.float32)

    def conv1x1(x, w):
        return lax.conv_general_dilated(
            x, w[None, None], (1, 1), "VALID",
            dimension_numbers=("NHWC", "HWIO", "NHWC"))

    def bn(y, g, b):
        mean = jnp.mean(y, axis=(0, 1, 2), keepdims=True)
        var = jnp.mean(jnp.square(y - mean), axis=(0, 1, 2), keepdims=True)
        return (y - mean) * lax.rsqrt(var + EPS) * g.reshape(1, 1, 1, -1) + \
            b.reshape(1, 1, 1, -1)

    out = jax.nn.relu(bn(conv1x1(x, w1), g1, b1))
    P = w2.shape[1]
    w2_hwio = w2.reshape(3, 3, P, P)
    out = lax.conv_general_dilated(
        out, w2_hwio, (1, 1), [(padding, padding), (padding, padding)],
        rhs_dilation=(rate, rate), dimension_numbers=("NHWC", "HWIO", "NHWC"))
    out = jax.nn.relu(bn(out, g2, b2))
    out = bn(conv1x1(out, w3), g3, b3)
    out = jax.nn.relu(out + x)
    return jnp.transpose(out, (0, 3, 1, 2))


# ---------------------------------------------------------------------------
if __name__ == "__main__":
    key = jax.random.PRNGKey(0)
    N, H, W = 2, 16, 16
    planes = 4
    inplanes = planes * 4   # downsample=None => inplanes == planes*expansion

    ks = jax.random.split(key, 10)
    w1 = 0.1 * jax.random.normal(ks[0], (inplanes, planes), jnp.float32)
    g1 = 1.0 + 0.1 * jax.random.normal(ks[1], (1, planes), jnp.float32)
    b1 = 0.1 * jax.random.normal(ks[2], (1, planes), jnp.float32)
    w2 = 0.1 * jax.random.normal(ks[3], (9, planes, planes), jnp.float32)
    g2 = 1.0 + 0.1 * jax.random.normal(ks[4], (1, planes), jnp.float32)
    b2 = 0.1 * jax.random.normal(ks[5], (1, planes), jnp.float32)
    w3 = 0.1 * jax.random.normal(ks[6], (planes, planes * 4), jnp.float32)
    g3 = 1.0 + 0.1 * jax.random.normal(ks[7], (1, planes * 4), jnp.float32)
    b3 = 0.1 * jax.random.normal(ks[8], (1, planes * 4), jnp.float32)
    x = jax.random.normal(ks[9], (N, inplanes, H, W), jnp.float32)   # NCHW

    params = (w1, g1, b1, w2, g2, b2, w3, g3, b3)

    # f32 path (tile_rows=128 -> 4 row tiles, exercises the two-pass BN).
    out = bottleneck_forward(x, params, rate=1, padding=1,
                             compute_dtype=jnp.float32, tile_rows=128)
    out = jax.block_until_ready(out)
    assert out.shape == (N, planes * 4, H, W), out.shape
    ref = bottleneck_ref(x, params, rate=1, padding=1)
    err = float(jnp.max(jnp.abs(out - ref)))
    assert err < 2e-3, f"f32 rate=1 max abs err {err}"

    # dilated (atrous) configuration, rate=padding=2.
    out_r2 = bottleneck_forward(x, params, rate=2, padding=2,
                                compute_dtype=jnp.float32, tile_rows=128)
    out_r2 = jax.block_until_ready(out_r2)
    ref_r2 = bottleneck_ref(x, params, rate=2, padding=2)
    err_r2 = float(jnp.max(jnp.abs(out_r2 - ref_r2)))
    assert err_r2 < 2e-3, f"f32 rate=2 max abs err {err_r2}"

    # bf16 MXU-operand / bf16-activation path (f32 accumulation + f32 BN math).
    out_bf = bottleneck_forward(x, params, rate=1, padding=1,
                                compute_dtype=jnp.bfloat16, tile_rows=128)
    out_bf = jax.block_until_ready(out_bf)
    assert out_bf.shape == (N, planes * 4, H, W)
    err_bf = float(jnp.max(jnp.abs(out_bf - ref)))
    assert err_bf < 0.3, f"bf16 max abs err {err_bf}"

    print("KERNEL_OK")
</pallas_src>

<mosaic_0001>
module attributes {stable_mosaic.version = 11 : i64} {
  func.func @_conv1x1_stats_kernel(%arg0: i32, %arg1: memref<128x128xf32, #tpu.memory_space<vmem>>, %arg2: memref<128x128xf32, #tpu.memory_space<vmem>>, %arg3: memref<128x128xf32, #tpu.memory_space<vmem>>, %arg4: memref<1x2x128xf32, #tpu.memory_space<vmem>>) attributes {dimension_semantics = [#tpu.dimension_semantics<parallel>], iteration_bounds = array<i64: 4>, scalar_prefetch = 0 : i64, scratch_operands = 0 : i64, tpu.core_type = #tpu.core_type<tc>, window_params = [{transform_indices = @transform_0, window_bounds = array<i64: 128, 128>}, {pipeline_mode = #tpu.pipeline_mode<synchronous>, transform_indices = @transform_1, window_bounds = array<i64: 128, 128>}, {transform_indices = @transform_2, window_bounds = array<i64: 128, 128>}, {transform_indices = @transform_3, window_bounds = array<i64: 1, 2, 128>}]} {
    %c0 = arith.constant 0 : index
    %c0_0 = arith.constant 0 : index
    %0 = vector.load %arg1[%c0, %c0_0] : memref<128x128xf32, #tpu.memory_space<vmem>>, vector<128x128xf32>
    %c0_1 = arith.constant 0 : index
    %c0_2 = arith.constant 0 : index
    %1 = vector.load %arg2[%c0_1, %c0_2] : memref<128x128xf32, #tpu.memory_space<vmem>>, vector<128x128xf32>
    %cst = arith.constant dense<0.000000e+00> : vector<128x128xf32>
    %2 = tpu.matmul %0, %1, %cst {dimension_numbers = #tpu.dot_dimension_numbers<[1], [0], [0], [1], [0, 0, 1, 1], [], []>} : vector<128x128xf32>, vector<128x128xf32>, vector<128x128xf32> -> vector<128x128xf32>
    %c0_3 = arith.constant 0 : index
    %c0_4 = arith.constant 0 : index
    %3 = vector.load %arg3[%c0_3, %c0_4] : memref<128x128xf32, #tpu.memory_space<vmem>>, vector<128x128xf32>
    tpu.vector_store %arg3[%c0_3, %c0_4], %2 {strides = array<i32>} : memref<128x128xf32, #tpu.memory_space<vmem>>, vector<128x128xf32>,
    %cst_5 = arith.constant 1.000000e+00 : f32
    %4 = vector.broadcast %cst_5 : f32 to vector<1x128xf32>
    %cst_6 = arith.constant dense<0.000000e+00> : vector<1x128xf32>
    %5 = tpu.matmul %4, %2, %cst_6 {dimension_numbers = #tpu.dot_dimension_numbers<[1], [0], [0], [1], [0, 0, 1, 1], [], []>} : vector<1x128xf32>, vector<128x128xf32>, vector<1x128xf32> -> vector<1x128xf32>
    %c0_7 = arith.constant 0 : index
    %c0_8 = arith.constant 0 : index
    %c0_9 = arith.constant 0 : index
    %6 = vector.load %arg4[%c0_7, %c0_8, %c0_9] : memref<1x2x128xf32, #tpu.memory_space<vmem>>, vector<1x1x128xf32>
    %7 = vector.shape_cast %6 : vector<1x1x128xf32> to vector<1x128xf32>
    %8 = vector.shape_cast %5 : vector<1x128xf32> to vector<1x1x128xf32>
    tpu.vector_store %arg4[%c0_7, %c0_8, %c0_9], %8 {strides = array<i32>} : memref<1x2x128xf32, #tpu.memory_space<vmem>>, vector<1x1x128xf32>,
    %9 = arith.mulf %2, %2 : vector<128x128xf32>
    %cst_10 = arith.constant dense<0.000000e+00> : vector<1x128xf32>
    %10 = tpu.matmul %4, %9, %cst_10 {dimension_numbers = #tpu.dot_dimension_numbers<[1], [0], [0], [1], [0, 0, 1, 1], [], []>} : vector<1x128xf32>, vector<128x128xf32>, vector<1x128xf32> -> vector<1x128xf32>
    %c0_11 = arith.constant 0 : index
    %c1 = arith.constant 1 : index
    %c0_12 = arith.constant 0 : index
    %11 = vector.load %arg4[%c0_11, %c1, %c0_12] : memref<1x2x128xf32, #tpu.memory_space<vmem>>, vector<1x1x128xf32>
    %12 = vector.shape_cast %11 : vector<1x1x128xf32> to vector<1x128xf32>
    %13 = vector.shape_cast %10 : vector<1x128xf32> to vector<1x1x128xf32>
    tpu.vector_store %arg4[%c0_11, %c1, %c0_12], %13 {strides = array<i32>} : memref<1x2x128xf32, #tpu.memory_space<vmem>>, vector<1x1x128xf32>,
    return
  }
  func.func @transform_0(%arg0: i32) -> (i32, i32) {
    %c0_i32 = arith.constant 0 : i32
    %c0_i32_0 = arith.constant 0 : i32
    return %arg0, %c0_i32 : i32, i32
  }
  func.func @transform_1(%arg0: i32) -> (i32, i32) {
    %c0_i32 = arith.constant 0 : i32
    %c0_i32_0 = arith.constant 0 : i32
    %c0_i32_1 = arith.constant 0 : i32
    return %c0_i32, %c0_i32_0 : i32, i32
  }
  func.func @transform_2(%arg0: i32) -> (i32, i32) {
    %c0_i32 = arith.constant 0 : i32
    %c0_i32_0 = arith.constant 0 : i32
    return %arg0, %c0_i32 : i32, i32
  }
  func.func @transform_3(%arg0: i32) -> (i32, i32, i32) {
    %c0_i32 = arith.constant 0 : i32
    %c0_i32_0 = arith.constant 0 : i32
    %c0_i32_1 = arith.constant 0 : i32
    return %arg0, %c0_i32, %c0_i32_0 : i32, i32, i32
  }
}

</mosaic_0001>

<llo_original>
// kernel: tpu_custom_call.1
$region0: #{tpu_custom_call.1}
  #allocation0 [shape = 'u32[]', space=smem, size = 0x4, offset = 0x4, fixed_abs, tag = 'smem constant byte address 0x4 - core index']
  #allocation1 [shape = 'u32[144,128]{1,0:T(1,128)}', space=vmem, size = 0x12000, scoped, tag = 'internal scratch']
  %s0 = inlined_call_operand.hbm [shape: f32[512,128], index: 0, kind: input, shape index: {}]
  %s1 = inlined_call_operand.hbm [shape: f32[128,128], index: 1, kind: input, shape index: {}]
  %s2 = inlined_call_operand.hbm [shape: f32[512,128], index: 2, kind: output, shape index: {0}]
  %s3 = inlined_call_operand.hbm [shape: f32[4,2,128], index: 3, kind: output, shape index: {1}]
  %4 = xla_tuple %s2, %s3
  %s5 = sld [smem:[#allocation0]]
  $region57: #{tpu_custom_call.1} parent=0
    _
  %s7 = ssub.s32 1, %s5
  %s8 = scalar_select 0, %s7, %s5
  $region1: #{tpu_custom_call.1} parent=0
    #allocation2 [shape = 'u8[131072]{0}', space=vmem, size = 0x20000, scoped, tag = 'input window, operand 0']
    #allocation3 [shape = 's32[2]{0}', space=sflag, size = 0x8, scoped, tag = 'scoped memory for tpu_custom_call.1']
    #allocation4 [shape = 's32[2]{0}', space=sflag, size = 0x8, scoped, tag = 'scoped memory for tpu_custom_call.1']
    #allocation5 [shape = 'u8[65536]{0}', space=vmem, size = 0x10000, scoped, tag = 'input window, operand 1, single buffered']
    #allocation6 [shape = 's32[1]{0}', space=sflag, size = 0x4, scoped, tag = 'scoped memory for tpu_custom_call.1']
    #allocation7 [shape = 'u8[131072]{0}', space=vmem, size = 0x20000, scoped, tag = 'output window, operand 0']
    #allocation8 [shape = 'u8[2048]{0}', space=vmem, size = 0x800, scoped, tag = 'output window, operand 1']
    #allocation9 [shape = 's32[2]{0}', space=sflag, size = 0x8, scoped, tag = 'scoped memory for tpu_custom_call.1']
    %9 = vsyncpa [#allocation3], 0
    %s10 = scalar_lea.sflag [#allocation3], 1
    %11 = vsyncpa %s10, 0
    %12 = vsyncpa [#allocation6], 0
    %13 = vsyncpa [#allocation4], 0
    %s14 = scalar_lea.sflag [#allocation4], 1
    %15 = vsyncpa %s14, 0
    %16 = vsyncpa [#allocation9], 0
    %s17 = scalar_lea.sflag [#allocation9], 1
    %18 = vsyncpa %s17, 0
    loop: start=0, step=1, limit=6
    $region2: #{tpu_custom_call.1} parent=1 // loop_pre_header
      _
    $region3: #{tpu_custom_call.1} parent=1 // loop_header
      %s20 = sphi 0, %s24
      %p21 = scmp.ge.s32.totalorder %s20, 6
      %s30 = sphi 0, %s32
      %s33 = sphi 0, %s30
      %s34 = sphi 0, %s33
      %s50 = sphi 0, %s34
      %s54 = sphi 0, %s54
      %s56 = sphi 0, %s54
      %s57 = sphi 0, %s56
      %s71 = sphi 0, %s57
      %s77 = sphi 0, %s79
      %s80 = sphi 0, %s77
      %s81 = sphi 0, %s80
      %s97 = sphi 0, %s81
      %s103 = sphi 0, %s105
      %s106 = sphi 0, %s103
      %s107 = sphi 0, %s106
      %s123 = sphi 0, %s107
    $region4: #{tpu_custom_call.1} parent=1 // loop_header_branch
      %23 = sbr.rel (%p21) target = $region8
    $region5: #{tpu_custom_call.1} parent=1 // loop_body
      %s25 = ssub.s32 %s20, 1
      %s26 = ssub.s32 %s20, 2
      %s27 = sadd.s32 %s20, 1
      %s28 = ssub.s32 %s20, %s27
      %p29 = scmp.eq.s32.totalorder %s28, 0
      %s31 = sadd.s32 %s30, 1
      %s32 = scalar_select %p29, %s30, %s31
      %p35 = pneg %p29
      %p36 = scmp.eq.s32.totalorder %s20, 3
      %p37 = por %p35, %p36
      %p38 = scmp.ne.s32.totalorder %s30, %s33
      %p39 = scmp.eq.s32.totalorder %s20, 0
      %p40 = por %p38, %p39
      %p41 = scmp.ne.s32.totalorder %s30, %s33
      %p42 = scmp.eq.s32.totalorder %s25, 3
      %p43 = por %p41, %p42
      %p44 = scmp.ne.s32.totalorder %s33, %s34
      %p45 = scmp.eq.s32.totalorder %s25, 0
      %p46 = por %p44, %p45
      %p47 = scmp.ne.s32.totalorder %s33, %s34
      %p48 = scmp.eq.s32.totalorder %s26, 3
      %p49 = por %p47, %p48
      %p51 = scmp.ne.s32.totalorder %s34, %s50
      %p52 = scmp.eq.s32.totalorder %s26, 0
      %p53 = por %p51, %p52
      %s55 = sadd.s32 %s54, 1
      %p58 = scmp.eq.s32.totalorder %s20, 3
      %p59 = scmp.ne.s32.totalorder %s54, %s56
      %p60 = scmp.eq.s32.totalorder %s20, 0
      %p61 = por %p59, %p60
      %p62 = scmp.ne.s32.totalorder %s54, %s56
      %p63 = scmp.eq.s32.totalorder %s25, 3
      %p64 = por %p62, %p63
      %p65 = scmp.ne.s32.totalorder %s56, %s57
      %p66 = scmp.eq.s32.totalorder %s25, 0
      %p67 = por %p65, %p66
      %p68 = scmp.ne.s32.totalorder %s56, %s57
      %p69 = scmp.eq.s32.totalorder %s26, 3
      %p70 = por %p68, %p69
      %p72 = scmp.ne.s32.totalorder %s57, %s71
      %p73 = scmp.eq.s32.totalorder %s26, 0
      %p74 = por %p72, %p73
      %s75 = ssub.s32 %s20, %s27
      %p76 = scmp.eq.s32.totalorder %s75, 0
      %s78 = sadd.s32 %s77, 1
      %s79 = scalar_select %p76, %s77, %s78
      %p82 = pneg %p76
      %p83 = scmp.eq.s32.totalorder %s20, 3
      %p84 = por %p82, %p83
      %p85 = scmp.ne.s32.totalorder %s77, %s80
      %p86 = scmp.eq.s32.totalorder %s20, 0
      %p87 = por %p85, %p86
      %p88 = scmp.ne.s32.totalorder %s77, %s80
      %p89 = scmp.eq.s32.totalorder %s25, 3
      %p90 = por %p88, %p89
      %p91 = scmp.ne.s32.totalorder %s80, %s81
      %p92 = scmp.eq.s32.totalorder %s25, 0
      %p93 = por %p91, %p92
      %p94 = scmp.ne.s32.totalorder %s80, %s81
      %p95 = scmp.eq.s32.totalorder %s26, 3
      %p96 = por %p94, %p95
      %p98 = scmp.ne.s32.totalorder %s81, %s97
      %p99 = scmp.eq.s32.totalorder %s26, 0
      %p100 = por %p98, %p99
      %s101 = ssub.s32 %s20, %s27
      %p102 = scmp.eq.s32.totalorder %s101, 0
      %s104 = sadd.s32 %s103, 1
      %s105 = scalar_select %p102, %s103, %s104
      %p108 = pneg %p102
      %p109 = scmp.eq.s32.totalorder %s20, 3
      %p110 = por %p108, %p109
      %p111 = scmp.ne.s32.totalorder %s103, %s106
      %p112 = scmp.eq.s32.totalorder %s20, 0
      %p113 = por %p111, %p112
      %p114 = scmp.ne.s32.totalorder %s103, %s106
      %p115 = scmp.eq.s32.totalorder %s25, 3
      %p116 = por %p114, %p115
      %p117 = scmp.ne.s32.totalorder %s106, %s107
      %p118 = scmp.eq.s32.totalorder %s25, 0
      %p119 = por %p117, %p118
      %p120 = scmp.ne.s32.totalorder %s106, %s107
      %p121 = scmp.eq.s32.totalorder %s26, 3
      %p122 = por %p120, %p121
      %p124 = scmp.ne.s32.totalorder %s107, %s123
      %p125 = scmp.eq.s32.totalorder %s26, 0
      %p126 = por %p124, %p125
      %p127 = scmp.le.s32.totalorder 1, %s20
      %p128 = scmp.lt.s32.totalorder %s20, 5
      %p129 = pnand %p127, %p128
      %p130 = pneg %p129
      // Predicated region
      $region9: #{tpu_custom_call.1} parent=5 // pred_check
        _
      $region10: #{tpu_custom_call.1} parent=5 // pred_check_branch
        %132 = sbr.rel (%p129) target = $region12
      $region11: #{tpu_custom_call.1} parent=5 // pred_region
        %s133 = ssub.s32 %s20, 1
        // Predicated region
        $region13: #{tpu_custom_call.1} parent=11 // pred_check
          %p134 = pneg %p67
        $region14: #{tpu_custom_call.1} parent=11 // pred_check_branch
          %136 = sbr.rel (%p134) target = $region16
        $region15: #{tpu_custom_call.1} parent=11 // pred_region
          %s138 = ssub.s32 2048, 2048
          %139 = vsyncadd [#allocation6], %s138
          %s140 = sshll.u32 [#allocation5], 4
          %s141 = int_to_ptr.vmem [resolvable:$true] %s140
          %146 = dma.hbm_to_vmem [thread:$0]  %s1, 2048, %s141, [#allocation6], 128, 128, 8
        $region16: #{tpu_custom_call.1} parent=11 // pred_fallthru
          _
      $region12: #{tpu_custom_call.1} parent=5 // pred_fallthru
        _
      %p147 = scmp.lt.s32.totalorder %s20, 4
      // Predicated region
      $region17: #{tpu_custom_call.1} parent=5 // pred_check
        %p148 = pneg %p147
      $region18: #{tpu_custom_call.1} parent=5 // pred_check_branch
        %150 = sbr.rel (%p148) target = $region20
      $region19: #{tpu_custom_call.1} parent=5 // pred_region
        // Predicated region
        $region21: #{tpu_custom_call.1} parent=19 // pred_check
          %p151 = pneg %p40
        $region22: #{tpu_custom_call.1} parent=19 // pred_check_branch
          %153 = sbr.rel (%p151) target = $region24
        $region23: #{tpu_custom_call.1} parent=19 // pred_region
          %s154 = sand.u32 %s30, 1
          %s155 = scalar_lea.sflag [#allocation3], %s154
          %s156 = sand.u32 %s30, 1
          %s157 = smul.addr %s156, 128
          %s158 = scalar_lea.vmem [#allocation2], %s157
          %s159 = smul.u32 16, %s20
          %s161 = ssub.s32 2048, 2048
          %162 = vsyncadd %s155, %s161
          %s163 = smul.addr %s159, 128
          %s164 = scalar_lea.hbm %s0, %s163
          %s165 = sshll.u32 %s158, 4
          %s166 = int_to_ptr.vmem [resolvable:$true] %s165
          %171 = dma.hbm_to_vmem [thread:$0]  %s164, 2048, %s166, %s155, 128, 128, 8
        $region24: #{tpu_custom_call.1} parent=19 // pred_fallthru
          _
      $region20: #{tpu_custom_call.1} parent=5 // pred_fallthru
        _
      %p172 = scmp.le.s32.totalorder 1, %s20
      %p173 = scmp.lt.s32.totalorder %s20, 5
      %p174 = pnand %p172, %p173
      %p175 = pneg %p174
      // Predicated region
      $region25: #{tpu_custom_call.1} parent=5 // pred_check
        _
      $region26: #{tpu_custom_call.1} parent=5 // pred_check_branch
        %177 = sbr.rel (%p174) target = $region28
      $region27: #{tpu_custom_call.1} parent=5 // pred_region
        %s178 = ssub.s32 %s20, 1
        %s179 = sand.u32 %s33, 1
        %s180 = scalar_lea.sflag [#allocation3], %s179
        %s181 = sand.u32 %s33, 1
        %s182 = smul.addr %s181, 128
        %s183 = scalar_lea.vmem [#allocation2], %s182
        // Predicated region
        $region29: #{tpu_custom_call.1} parent=27 // pred_check
          %p184 = pneg %p46
        $region30: #{tpu_custom_call.1} parent=27 // pred_check_branch
          %186 = sbr.rel (%p184) target = $region32
        $region31: #{tpu_custom_call.1} parent=27 // pred_region
          %187 = dma.done %s180, 2048
        $region32: #{tpu_custom_call.1} parent=27 // pred_fallthru
          _
        // Predicated region
        $region33: #{tpu_custom_call.1} parent=27 // pred_check
          %p188 = pneg %p67
        $region34: #{tpu_custom_call.1} parent=27 // pred_check_branch
          %190 = sbr.rel (%p188) target = $region36
        $region35: #{tpu_custom_call.1} parent=27 // pred_region
          %191 = dma.done [#allocation6], 2048
        $region36: #{tpu_custom_call.1} parent=27 // pred_fallthru
          _
        %s192 = sand.u32 %s33, 1
        %s193 = scalar_lea.sflag [#allocation3], %s192
        %s194 = sand.u32 %s33, 1
        %s195 = smul.addr %s194, 128
        %s196 = scalar_lea.vmem [#allocation2], %s195
        %p197 = pneg %p46
        %p198 = pneg %p43
        %p199 = pneg %p67
        %p200 = pneg %p64
        %p201 = pneg %p93
        %p202 = pneg %p90
        %s203 = sand.u32 %s80, 1
        %s204 = scalar_lea.sflag [#allocation4], %s203
        %s205 = sand.u32 %s80, 1
        %s206 = smul.addr %s205, 128
        %s207 = scalar_lea.vmem [#allocation7], %s206
        %p208 = pneg %p119
        %p209 = pneg %p116
        %s210 = sand.u32 %s106, 1
        %s211 = scalar_lea.sflag [#allocation9], %s210
        %s212 = sand.u32 %s106, 1
        %s213 = smul.addr %s212, 2
        %s214 = scalar_lea.vmem [#allocation8], %s213
        %s215 = smul.u32 16, %s25
        %s216 = smul.u32 16, %s25
        %v217 = vld [vmem:[%s183] sm:$0xff]
        %v218 = vld [vmem:[%s183 + $0x8] sm:$0xff]
        %v219 = vld [vmem:[%s183 + $0x10] sm:$0xff]
        %v220 = vld [vmem:[%s183 + $0x18] sm:$0xff]
        %v221 = vld [vmem:[%s183 + $0x20] sm:$0xff]
        %v222 = vld [vmem:[%s183 + $0x28] sm:$0xff]
        %v223 = vld [vmem:[%s183 + $0x30] sm:$0xff]
        %v224 = vld [vmem:[%s183 + $0x38] sm:$0xff]
        %v225 = vld [vmem:[%s183 + $0x40] sm:$0xff]
        %v226 = vld [vmem:[%s183 + $0x48] sm:$0xff]
        %v227 = vld [vmem:[%s183 + $0x50] sm:$0xff]
        %v228 = vld [vmem:[%s183 + $0x58] sm:$0xff]
        %v229 = vld [vmem:[%s183 + $0x60] sm:$0xff]
        %v230 = vld [vmem:[%s183 + $0x68] sm:$0xff]
        %v231 = vld [vmem:[%s183 + $0x70] sm:$0xff]
        %v232 = vld [vmem:[%s183 + $0x78] sm:$0xff]
        %v233 = vld [vmem:[#allocation5] sm:$0xff]
        %v234 = vld [vmem:[#allocation5 + $0x8] sm:$0xff]
        %v235 = vld [vmem:[#allocation5 + $0x10] sm:$0xff]
        %v236 = vld [vmem:[#allocation5 + $0x18] sm:$0xff]
        %v237 = vld [vmem:[#allocation5 + $0x20] sm:$0xff]
        %v238 = vld [vmem:[#allocation5 + $0x28] sm:$0xff]
        %v239 = vld [vmem:[#allocation5 + $0x30] sm:$0xff]
        %v240 = vld [vmem:[#allocation5 + $0x38] sm:$0xff]
        %v241 = vld [vmem:[#allocation5 + $0x40] sm:$0xff]
        %v242 = vld [vmem:[#allocation5 + $0x48] sm:$0xff]
        %v243 = vld [vmem:[#allocation5 + $0x50] sm:$0xff]
        %v244 = vld [vmem:[#allocation5 + $0x58] sm:$0xff]
        %v245 = vld [vmem:[#allocation5 + $0x60] sm:$0xff]
        %v246 = vld [vmem:[#allocation5 + $0x68] sm:$0xff]
        %v247 = vld [vmem:[#allocation5 + $0x70] sm:$0xff]
        %v248 = vld [vmem:[#allocation5 + $0x78] sm:$0xff]
        %249 = vmatprep.subr.mxu0 0.0
        %250 = vmatpush1.msra.mxu0 %v233
        %251 = vmatprep.subr.mxu0 0.0
        %252 = vmatpush1.msra.mxu0 %v234
        %253 = vmatprep.subr.mxu0 0.0
        %254 = vmatpush1.msra.mxu0 %v235
        %255 = vmatprep.subr.mxu0 0.0
        %256 = vmatpush1.msra.mxu0 %v236
        %257 = vmatprep.subr.mxu0 0.0
        %258 = vmatpush1.msra.mxu0 %v237
        %259 = vmatprep.subr.mxu0 0.0
        %260 = vmatpush1.msra.mxu0 %v238
        %261 = vmatprep.subr.mxu0 0.0
        %262 = vmatpush1.msra.mxu0 %v239
        %263 = vmatprep.subr.mxu0 0.0
        %264 = vmatpush1.msra.mxu0 %v240
        %265 = vmatprep.subr.mxu0 0.0
        %266 = vmatpush1.msra.mxu0 %v241
        %267 = vmatprep.subr.mxu0 0.0
        %268 = vmatpush1.msra.mxu0 %v242
        %269 = vmatprep.subr.mxu0 0.0
        %270 = vmatpush1.msra.mxu0 %v243
        %271 = vmatprep.subr.mxu0 0.0
        %272 = vmatpush1.msra.mxu0 %v244
        %273 = vmatprep.subr.mxu0 0.0
        %274 = vmatpush1.msra.mxu0 %v245
        %275 = vmatprep.subr.mxu0 0.0
        %276 = vmatpush1.msra.mxu0 %v246
        %277 = vmatprep.subr.mxu0 0.0
        %278 = vmatpush1.msra.mxu0 %v247
        %279 = vmatprep.subr.mxu0 0.0
        %280 = vmatpush1.msra.mxu0 %v248
        %281 = vmatprep.subr.mxu0 0.0
        %282 = vmatpush1.msra.mxu0 0.0
        %283 = vmatprep.subr.mxu0 0.0
        %284 = vmatpush1.msra.mxu0 0.0
        %285 = vmatprep.subr.mxu0 0.0
        %286 = vmatpush1.msra.mxu0 0.0
        %287 = vmatprep.subr.mxu0 0.0
        %288 = vmatpush1.msra.mxu0 0.0
        %289 = vmatprep.subr.mxu0 0.0
        %290 = vmatpush1.msra.mxu0 0.0
        %291 = vmatprep.subr.mxu0 0.0
        %292 = vmatpush1.msra.mxu0 0.0
        %293 = vmatprep.subr.mxu0 0.0
        %294 = vmatpush1.msra.mxu0 0.0
        %295 = vmatprep.subr.mxu0 0.0
        %296 = vmatpush1.msra.mxu0 0.0
        %297 = vmatprep.subr.mxu0 0.0
        %298 = vmatpush1.msra.mxu0 0.0
        %299 = vmatprep.subr.mxu0 0.0
        %300 = vmatpush1.msra.mxu0 0.0
        %301 = vmatprep.subr.mxu0 0.0
        %302 = vmatpush1.msra.mxu0 0.0
        %303 = vmatprep.subr.mxu0 0.0
        %304 = vmatpush1.msra.mxu0 0.0
        %305 = vmatprep.subr.mxu0 0.0
        %306 = vmatpush1.msra.mxu0 0.0
        %307 = vmatprep.subr.mxu0 0.0
        %308 = vmatpush1.msra.mxu0 0.0
        %309 = vmatprep.subr.mxu0 0.0
        %310 = vmatpush1.msra.mxu0 0.0
        %311 = vmatprep.subr.mxu0 0.0
        %312 = vmatpush1.msra.mxu0 0.0
        %313 = vmatprep.mubr.f32.mxu0 0.0
        %314 = vmatmul.mubr.f32.gmra.mrb[0].mxu0 %v217
        %v315 = vpop.f32.mrb[0].mxu0
        %v316 = vadd.f32 0.0, %v315
        %v317 = vpop.f32.mrb[0].mxu0
        %318 = vmatprep.mubr.f32.mxu0 0.0
        %319 = vmatmul.mubr.f32.gmra.mrb[0].mxu0 %v218
        %v320 = vpop.f32.mrb[0].mxu0
        %v321 = vadd.f32 0.0, %v320
        %v322 = vpop.f32.mrb[0].mxu0
        %323 = vmatprep.mubr.f32.mxu0 0.0
        %324 = vmatmul.mubr.f32.gmra.mrb[0].mxu0 %v219
        %v325 = vpop.f32.mrb[0].mxu0
        %v326 = vadd.f32 0.0, %v325
        %v327 = vpop.f32.mrb[0].mxu0
        %328 = vmatprep.mubr.f32.mxu0 0.0
        %329 = vmatmul.mubr.f32.gmra.mrb[0].mxu0 %v220
        %v330 = vpop.f32.mrb[0].mxu0
        %v331 = vadd.f32 0.0, %v330
        %v332 = vpop.f32.mrb[0].mxu0
        %333 = vmatprep.mubr.f32.mxu0 0.0
        %334 = vmatmul.mubr.f32.gmra.mrb[0].mxu0 %v221
        %v335 = vpop.f32.mrb[0].mxu0
        %v336 = vadd.f32 0.0, %v335
        %v337 = vpop.f32.mrb[0].mxu0
        %338 = vmatprep.mubr.f32.mxu0 0.0
        %339 = vmatmul.mubr.f32.gmra.mrb[0].mxu0 %v222
        %v340 = vpop.f32.mrb[0].mxu0
        %v341 = vadd.f32 0.0, %v340
        %v342 = vpop.f32.mrb[0].mxu0
        %343 = vmatprep.mubr.f32.mxu0 0.0
        %344 = vmatmul.mubr.f32.gmra.mrb[0].mxu0 %v223
        %v345 = vpop.f32.mrb[0].mxu0
        %v346 = vadd.f32 0.0, %v345
        %v347 = vpop.f32.mrb[0].mxu0
        %348 = vmatprep.mubr.f32.mxu0 0.0
        %349 = vmatmul.mubr.f32.gmra.mrb[0].mxu0 %v224
        %v350 = vpop.f32.mrb[0].mxu0
        %v351 = vadd.f32 0.0, %v350
        %v352 = vpop.f32.mrb[0].mxu0
        %353 = vmatprep.mubr.f32.mxu0 0.0
        %354 = vmatmul.mubr.f32.gmra.mrb[0].mxu0 %v225
        %v355 = vpop.f32.mrb[0].mxu0
        %v356 = vadd.f32 0.0, %v355
        %v357 = vpop.f32.mrb[0].mxu0
        %358 = vmatprep.mubr.f32.mxu0 0.0
        %359 = vmatmul.mubr.f32.gmra.mrb[0].mxu0 %v226
        %v360 = vpop.f32.mrb[0].mxu0
        %v361 = vadd.f32 0.0, %v360
        %v362 = vpop.f32.mrb[0].mxu0
        %363 = vmatprep.mubr.f32.mxu0 0.0
        %364 = vmatmul.mubr.f32.gmra.mrb[0].mxu0 %v227
        %v365 = vpop.f32.mrb[0].mxu0
        %v366 = vadd.f32 0.0, %v365
        %v367 = vpop.f32.mrb[0].mxu0
        %368 = vmatprep.mubr.f32.mxu0 0.0
        %369 = vmatmul.mubr.f32.gmra.mrb[0].mxu0 %v228
        %v370 = vpop.f32.mrb[0].mxu0
        %v371 = vadd.f32 0.0, %v370
        %v372 = vpop.f32.mrb[0].mxu0
        %373 = vmatprep.mubr.f32.mxu0 0.0
        %374 = vmatmul.mubr.f32.gmra.mrb[0].mxu0 %v229
        %v375 = vpop.f32.mrb[0].mxu0
        %v376 = vadd.f32 0.0, %v375
        %v377 = vpop.f32.mrb[0].mxu0
        %378 = vmatprep.mubr.f32.mxu0 0.0
        %379 = vmatmul.mubr.f32.gmra.mrb[0].mxu0 %v230
        %v380 = vpop.f32.mrb[0].mxu0
        %v381 = vadd.f32 0.0, %v380
        %v382 = vpop.f32.mrb[0].mxu0
        %383 = vmatprep.mubr.f32.mxu0 0.0
        %384 = vmatmul.mubr.f32.gmra.mrb[0].mxu0 %v231
        %v385 = vpop.f32.mrb[0].mxu0
        %v386 = vadd.f32 0.0, %v385
        %v387 = vpop.f32.mrb[0].mxu0
        %388 = vmatprep.mubr.f32.mxu0 0.0
        %389 = vmatmul.mubr.f32.gmra.mrb[0].mxu0 %v232
        %v390 = vpop.f32.mrb[0].mxu0
        %v391 = vadd.f32 0.0, %v390
        %v392 = vpop.f32.mrb[0].mxu0
        %393 = vdwg.mxu0
        %394 = vst [vmem:[%s207] sm:$0xff] %v316
        %395 = vst [vmem:[%s207 + $0x8] sm:$0xff] %v321
        %396 = vst [vmem:[%s207 + $0x10] sm:$0xff] %v326
        %397 = vst [vmem:[%s207 + $0x18] sm:$0xff] %v331
        %398 = vst [vmem:[%s207 + $0x20] sm:$0xff] %v336
        %399 = vst [vmem:[%s207 + $0x28] sm:$0xff] %v341
        %400 = vst [vmem:[%s207 + $0x30] sm:$0xff] %v346
        %401 = vst [vmem:[%s207 + $0x38] sm:$0xff] %v351
        %402 = vst [vmem:[%s207 + $0x40] sm:$0xff] %v356
        %403 = vst [vmem:[%s207 + $0x48] sm:$0xff] %v361
        %404 = vst [vmem:[%s207 + $0x50] sm:$0xff] %v366
        %405 = vst [vmem:[%s207 + $0x58] sm:$0xff] %v371
        %406 = vst [vmem:[%s207 + $0x60] sm:$0xff] %v376
        %407 = vst [vmem:[%s207 + $0x68] sm:$0xff] %v381
        %408 = vst [vmem:[%s207 + $0x70] sm:$0xff] %v386
        %409 = vst [vmem:[%s207 + $0x78] sm:$0xff] %v391
        %410 = vmatprep.subr.mxu0 0.0
        %411 = vmatpush1.msra.mxu0 %v316
        %412 = vmatprep.subr.mxu0 0.0
        %413 = vmatpush1.msra.mxu0 %v321
        %414 = vmatprep.subr.mxu0 0.0
        %415 = vmatpush1.msra.mxu0 %v326
        %416 = vmatprep.subr.mxu0 0.0
        %417 = vmatpush1.msra.mxu0 %v331
        %418 = vmatprep.subr.mxu0 0.0
        %419 = vmatpush1.msra.mxu0 %v336
        %420 = vmatprep.subr.mxu0 0.0
        %421 = vmatpush1.msra.mxu0 %v341
        %422 = vmatprep.subr.mxu0 0.0
        %423 = vmatpush1.msra.mxu0 %v346
        %424 = vmatprep.subr.mxu0 0.0
        %425 = vmatpush1.msra.mxu0 %v351
        %426 = vmatprep.subr.mxu0 0.0
        %427 = vmatpush1.msra.mxu0 %v356
        %428 = vmatprep.subr.mxu0 0.0
        %429 = vmatpush1.msra.mxu0 %v361
        %430 = vmatprep.subr.mxu0 0.0
        %431 = vmatpush1.msra.mxu0 %v366
        %432 = vmatprep.subr.mxu0 0.0
        %433 = vmatpush1.msra.mxu0 %v371
        %434 = vmatprep.subr.mxu0 0.0
        %435 = vmatpush1.msra.mxu0 %v376
        %436 = vmatprep.subr.mxu0 0.0
        %437 = vmatpush1.msra.mxu0 %v381
        %438 = vmatprep.subr.mxu0 0.0
        %439 = vmatpush1.msra.mxu0 %v386
        %440 = vmatprep.subr.mxu0 0.0
        %441 = vmatpush1.msra.mxu0 %v391
        %442 = vmatprep.subr.mxu0 0.0
        %443 = vmatpush1.msra.mxu0 0.0
        %444 = vmatprep.subr.mxu0 0.0
        %445 = vmatpush1.msra.mxu0 0.0
        %446 = vmatprep.subr.mxu0 0.0
        %447 = vmatpush1.msra.mxu0 0.0
        %448 = vmatprep.subr.mxu0 0.0
        %449 = vmatpush1.msra.mxu0 0.0
        %450 = vmatprep.subr.mxu0 0.0
        %451 = vmatpush1.msra.mxu0 0.0
        %452 = vmatprep.subr.mxu0 0.0
        %453 = vmatpush1.msra.mxu0 0.0
        %454 = vmatprep.subr.mxu0 0.0
        %455 = vmatpush1.msra.mxu0 0.0
        %456 = vmatprep.subr.mxu0 0.0
        %457 = vmatpush1.msra.mxu0 0.0
        %458 = vmatprep.subr.mxu0 0.0
        %459 = vmatpush1.msra.mxu0 0.0
        %460 = vmatprep.subr.mxu0 0.0
        %461 = vmatpush1.msra.mxu0 0.0
        %462 = vmatprep.subr.mxu0 0.0
        %463 = vmatpush1.msra.mxu0 0.0
        %464 = vmatprep.subr.mxu0 0.0
        %465 = vmatpush1.msra.mxu0 0.0
        %466 = vmatprep.subr.mxu0 0.0
        %467 = vmatpush1.msra.mxu0 0.0
        %468 = vmatprep.subr.mxu0 0.0
        %469 = vmatpush1.msra.mxu0 0.0
        %470 = vmatprep.subr.mxu0 0.0
        %471 = vmatpush1.msra.mxu0 0.0
        %472 = vmatprep.subr.mxu0 0.0
        %473 = vmatpush1.msra.mxu0 0.0
        %474 = vmatprep.mubr.f32.mxu0 0.0
        %475 = vmatmul.mubr.f32.gmra.mrb[0].mxu0 1.0
        %v476 = vpop.f32.mrb[0].mxu0
        %v477 = vadd.f32 0.0, %v476
        %v478 = vpop.f32.mrb[0].mxu0
        %479 = vdwg.mxu0
        %480 = vst [vmem:[%s214] sm:$0x1] %v477
        %v481 = vmul.f32 %v316, %v316
        %v482 = vmul.f32 %v321, %v321
        %v483 = vmul.f32 %v326, %v326
        %v484 = vmul.f32 %v331, %v331
        %v485 = vmul.f32 %v336, %v336
        %v486 = vmul.f32 %v341, %v341
        %v487 = vmul.f32 %v346, %v346
        %v488 = vmul.f32 %v351, %v351
        %v489 = vmul.f32 %v356, %v356
        %v490 = vmul.f32 %v361, %v361
        %v491 = vmul.f32 %v366, %v366
        %v492 = vmul.f32 %v371, %v371
        %v493 = vmul.f32 %v376, %v376
        %v494 = vmul.f32 %v381, %v381
        %v495 = vmul.f32 %v386, %v386
        %v496 = vmul.f32 %v391, %v391
        %497 = vmatprep.subr.mxu0 0.0
        %498 = vmatpush1.msra.mxu0 %v481
        %499 = vmatprep.subr.mxu0 0.0
        %500 = vmatpush1.msra.mxu0 %v482
        %501 = vmatprep.subr.mxu0 0.0
        %502 = vmatpush1.msra.mxu0 %v483
        %503 = vmatprep.subr.mxu0 0.0
        %504 = vmatpush1.msra.mxu0 %v484
        %505 = vmatprep.subr.mxu0 0.0
        %506 = vmatpush1.msra.mxu0 %v485
        %507 = vmatprep.subr.mxu0 0.0
        %508 = vmatpush1.msra.mxu0 %v486
        %509 = vmatprep.subr.mxu0 0.0
        %510 = vmatpush1.msra.mxu0 %v487
        %511 = vmatprep.subr.mxu0 0.0
        %512 = vmatpush1.msra.mxu0 %v488
        %513 = vmatprep.subr.mxu0 0.0
        %514 = vmatpush1.msra.mxu0 %v489
        %515 = vmatprep.subr.mxu0 0.0
        %516 = vmatpush1.msra.mxu0 %v490
        %517 = vmatprep.subr.mxu0 0.0
        %518 = vmatpush1.msra.mxu0 %v491
        %519 = vmatprep.subr.mxu0 0.0
        %520 = vmatpush1.msra.mxu0 %v492
        %521 = vmatprep.subr.mxu0 0.0
        %522 = vmatpush1.msra.mxu0 %v493
        %523 = vmatprep.subr.mxu0 0.0
        %524 = vmatpush1.msra.mxu0 %v494
        %525 = vmatprep.subr.mxu0 0.0
        %526 = vmatpush1.msra.mxu0 %v495
        %527 = vmatprep.subr.mxu0 0.0
        %528 = vmatpush1.msra.mxu0 %v496
        %529 = vmatprep.subr.mxu0 0.0
        %530 = vmatpush1.msra.mxu0 0.0
        %531 = vmatprep.subr.mxu0 0.0
        %532 = vmatpush1.msra.mxu0 0.0
        %533 = vmatprep.subr.mxu0 0.0
        %534 = vmatpush1.msra.mxu0 0.0
        %535 = vmatprep.subr.mxu0 0.0
        %536 = vmatpush1.msra.mxu0 0.0
        %537 = vmatprep.subr.mxu0 0.0
        %538 = vmatpush1.msra.mxu0 0.0
        %539 = vmatprep.subr.mxu0 0.0
        %540 = vmatpush1.msra.mxu0 0.0
        %541 = vmatprep.subr.mxu0 0.0
        %542 = vmatpush1.msra.mxu0 0.0
        %543 = vmatprep.subr.mxu0 0.0
        %544 = vmatpush1.msra.mxu0 0.0
        %545 = vmatprep.subr.mxu0 0.0
        %546 = vmatpush1.msra.mxu0 0.0
        %547 = vmatprep.subr.mxu0 0.0
        %548 = vmatpush1.msra.mxu0 0.0
        %549 = vmatprep.subr.mxu0 0.0
        %550 = vmatpush1.msra.mxu0 0.0
        %551 = vmatprep.subr.mxu0 0.0
        %552 = vmatpush1.msra.mxu0 0.0
        %553 = vmatprep.subr.mxu0 0.0
        %554 = vmatpush1.msra.mxu0 0.0
        %555 = vmatprep.subr.mxu0 0.0
        %556 = vmatpush1.msra.mxu0 0.0
        %557 = vmatprep.subr.mxu0 0.0
        %558 = vmatpush1.msra.mxu0 0.0
        %559 = vmatprep.subr.mxu0 0.0
        %560 = vmatpush1.msra.mxu0 0.0
        %561 = vmatprep.mubr.f32.mxu0 0.0
        %562 = vmatmul.mubr.f32.gmra.mrb[0].mxu0 1.0
        %v563 = vpop.f32.mrb[0].mxu0
        %v564 = vadd.f32 0.0, %v563
        %v565 = vpop.f32.mrb[0].mxu0
        %566 = vdwg.mxu0
        %567 = vst [vmem:[%s214 + $0x1] sm:$0x1] %v564
        %s568 = sand.u32 %s80, 1
        %s569 = scalar_lea.sflag [#allocation4], %s568
        %s570 = sand.u32 %s80, 1
        %s571 = smul.addr %s570, 128
        %s572 = scalar_lea.vmem [#allocation7], %s571
        %s573 = sand.u32 %s106, 1
        %s574 = scalar_lea.sflag [#allocation9], %s573
        %s575 = sand.u32 %s106, 1
        %s576 = smul.addr %s575, 2
        %s577 = scalar_lea.vmem [#allocation8], %s576
        // Predicated region
        $region37: #{tpu_custom_call.1} parent=27 // pred_check
          %p578 = pneg %p90
        $region38: #{tpu_custom_call.1} parent=27 // pred_check_branch
          %580 = sbr.rel (%p578) target = $region40
        $region39: #{tpu_custom_call.1} parent=27 // pred_region
          %s581 = smul.u32 16, %s25
          %s583 = ssub.s32 2048, 2048
          %584 = vsyncadd %s569, %s583
          %s585 = smul.addr %s581, 128
          %s586 = scalar_lea.hbm %s2, %s585
          %s587 = sshll.u32 %s572, 4
          %s588 = int_to_ptr.vmem [resolvable:$true] %s587
          %593 = dma.vmem_to_hbm [thread:$0]  %s588, 2048, %s586, %s569, 128, 128, 8
        $region40: #{tpu_custom_call.1} parent=27 // pred_fallthru
          _
        // Predicated region
        $region41: #{tpu_custom_call.1} parent=27 // pred_check
          %p594 = pneg %p116
        $region42: #{tpu_custom_call.1} parent=27 // pred_check_branch
          %596 = sbr.rel (%p594) target = $region44
        $region43: #{tpu_custom_call.1} parent=27 // pred_region
          %s598 = ssub.s32 32, 32
          %599 = vsyncadd %s574, %s598
          %s600 = smul.addr %s25, 32
          %s601 = scalar_lea.hbm %s3, %s600
          %s603 = sshll.u32 %s577, 4
          %s604 = int_to_ptr.vmem [resolvable:$true] %s603
          %606 = dma.vmem_to_hbm [thread:$0]  %s604, 32, %s601, %s574
        $region44: #{tpu_custom_call.1} parent=27 // pred_fallthru
          _
      $region28: #{tpu_custom_call.1} parent=5 // pred_fallthru
        _
      %p607 = scmp.le.s32.totalorder 2, %s20
      // Predicated region
      $region45: #{tpu_custom_call.1} parent=5 // pred_check
        %p608 = pneg %p607
      $region46: #{tpu_custom_call.1} parent=5 // pred_check_branch
        %610 = sbr.rel (%p608) target = $region48
      $region47: #{tpu_custom_call.1} parent=5 // pred_region
        %s611 = ssub.s32 %s20, 2
        // Predicated region
        $region49: #{tpu_custom_call.1} parent=47 // pred_check
          %p612 = pneg %p96
        $region50: #{tpu_custom_call.1} parent=47 // pred_check_branch
          %614 = sbr.rel (%p612) target = $region52
        $region51: #{tpu_custom_call.1} parent=47 // pred_region
          %s615 = sand.u32 %s81, 1
          %s616 = scalar_lea.sflag [#allocation4], %s615
          %s617 = sand.u32 %s81, 1
          %s618 = smul.addr %s617, 128
          %s619 = scalar_lea.vmem [#allocation7], %s618
          %620 = dma.done %s616, 2048
        $region52: #{tpu_custom_call.1} parent=47 // pred_fallthru
          _
        // Predicated region
        $region53: #{tpu_custom_call.1} parent=47 // pred_check
          %p621 = pneg %p122
        $region54: #{tpu_custom_call.1} parent=47 // pred_check_branch
          %623 = sbr.rel (%p621) target = $region56
        $region55: #{tpu_custom_call.1} parent=47 // pred_region
          %s624 = sand.u32 %s107, 1
          %s625 = scalar_lea.sflag [#allocation9], %s624
          %s626 = sand.u32 %s107, 1
          %s627 = smul.addr %s626, 2
          %s628 = scalar_lea.vmem [#allocation8], %s627
          %629 = dma.done %s625, 32
        $region56: #{tpu_custom_call.1} parent=47 // pred_fallthru
          _
      $region48: #{tpu_custom_call.1} parent=5 // pred_fallthru
        _
    $region6: #{tpu_custom_call.1} parent=1 // loop_footer
      %s24 = sadd.s32 1, %s20
    $region7: #{tpu_custom_call.1} parent=1 // loop_footer_branch
      %19 = sbr.rel target = $region3
    $region8: #{tpu_custom_call.1} parent=1 // loop_exit
      _
    %630 = vsyncpa [#allocation3], 1
    %s631 = scalar_lea.sflag [#allocation3], 1
    %632 = vsyncpa %s631, 1
    %633 = vsyncpa [#allocation6], 1
    %634 = vsyncpa [#allocation4], 1
    %s635 = scalar_lea.sflag [#allocation4], 1
    %636 = vsyncpa %s635, 1
    %637 = vsyncpa [#allocation9], 1
    %s638 = scalar_lea.sflag [#allocation9], 1
    %639 = vsyncpa %s638, 1

</llo_original>
